<compile_context>
chip_gen: v7x
topology: tpu7x:2x2x1
jax: 0.10.0
libtpu: 0.0.40
codegen_flags: <defaults>
</compile_context>

<pallas_src>
import numpy as np
import jax
import jax.numpy as jnp
from jax.experimental import pallas as pl
from jax.experimental.pallas import tpu as pltpu


def _make_kernel(H, W, C_in, C1, Cw):
    """Fused backbone1 kernel for one NCHW image: (C, H*W) tiles, spatial on lanes."""
    N = H * W

    def kernel(x_ref, mask_ref, w1_ref, b0_ref, wb1_ref, b1_ref,
               w3_ref, b2_ref, wb3_ref, b3_ref, out_ref):
        x = x_ref[0]                                                # (C_in, N)

        # --- backbone: conv1 (1x1, 3->20) + folded BN + ReLU ---
        t0 = jnp.dot(w1_ref[...], x, preferred_element_type=jnp.float32)
        t0 = jnp.maximum(t0 + b0_ref[...], 0.0)                     # (C1, N) identity

        # --- bottleneck conv1 (1x1, 20->10) + folded BN + ReLU ---
        t1 = jnp.dot(wb1_ref[...], t0, preferred_element_type=jnp.float32)
        t1 = jnp.maximum(t1 + b1_ref[...], 0.0)                     # (Cw, N)

        # --- bottleneck conv2 (3x3, pad=1, 10->10): 9 lane-rolled, border-masked
        #     taps fused into a single K = 9*Cw matmul ---
        taps = []
        for kh in range(3):
            for kw in range(3):
                k = kh * 3 + kw
                d = (kh - 1) * W + (kw - 1)          # static flattened-spatial shift
                shifted = t1 if d == 0 else pltpu.roll(t1, (-d) % N, axis=1)
                taps.append(shifted * mask_ref[k])   # mask kills wrap-around/border
        tcat = jnp.concatenate(taps, axis=0)                        # (9*Cw, N)
        t2 = jnp.dot(w3_ref[...], tcat, preferred_element_type=jnp.float32)
        t2 = jnp.maximum(t2 + b2_ref[...], 0.0)                     # (Cw, N)

        # --- bottleneck conv3 (1x1, 10->20) + folded BN + residual + ReLU ---
        t3 = jnp.dot(wb3_ref[...], t2, preferred_element_type=jnp.float32)
        out_ref[0] = jnp.maximum(t3 + b3_ref[...] + t0, 0.0)

    return kernel


def _border_masks(H, W):
    """(9, 1, H*W) f32 validity mask per 3x3 tap (1 = in-image, 0 = border/wrap)."""
    N = H * W
    p = np.arange(N)
    hh, ww = p // W, p % W
    masks = np.zeros((9, 1, N), np.float32)
    for kh in range(3):
        for kw in range(3):
            dh, dw = kh - 1, kw - 1
            valid = (hh + dh >= 0) & (hh + dh < H) & (ww + dw >= 0) & (ww + dw < W)
            masks[kh * 3 + kw, 0] = valid.astype(np.float32)
    return jnp.asarray(masks)


def fold_bn(w, bn, eps=1e-5):
    """Fold eval-mode BatchNorm (gamma, beta, mean, var) into conv weight + bias."""
    gamma, beta, mean, var = bn
    scale = gamma / jnp.sqrt(var + eps)
    if w.ndim == 2:                      # (C_out, C_in) 1x1 conv
        wf = w * scale[:, None]
    else:                                # (9, C_out, C_in) 3x3 taps
        wf = w * scale[None, :, None]
    bias = (beta - mean * scale)[:, None]          # (C_out, 1)
    return wf, bias


def backbone1_forward(x_nchw, folded):
    """folded = (w1f, b0, wb1f, b1, w3taps_f, b2, wb3f, b3) with BN pre-folded."""
    w1f, b0, wb1f, b1, w3taps, b2, wb3f, b3 = folded
    B, C_in, H, W = x_nchw.shape
    N = H * W
    C1 = w1f.shape[0]
    Cw = wb1f.shape[0]

    # glue: only free reshapes -- no NCHW<->NHWC transposes
    x = x_nchw.reshape(B, C_in, N).astype(jnp.float32)
    # (9, C_out, C_in) taps -> (C_out, 9*C_in) for the fused K=9*Cw matmul
    w3cat = jnp.transpose(w3taps, (1, 0, 2)).reshape(Cw, 9 * Cw)
    masks = _border_masks(H, W)

    kernel = _make_kernel(H, W, C_in, C1, Cw)

    def const_spec(a):
        zeros = (0,) * a.ndim
        return pl.BlockSpec(a.shape, lambda b, z=zeros: z)

    consts = (masks, w1f, b0, wb1f, b1, w3cat, b2, wb3f, b3)
    in_specs = [pl.BlockSpec((1, C_in, N), lambda b: (b, 0, 0))]
    in_specs += [const_spec(a) for a in consts]

    out = pl.pallas_call(
        kernel,
        out_shape=jax.ShapeDtypeStruct((B, C1, N), jnp.float32),
        grid_spec=pltpu.PrefetchScalarGridSpec(
            num_scalar_prefetch=0,
            grid=(B,),
            in_specs=in_specs,
            out_specs=pl.BlockSpec((1, C1, N), lambda b: (b, 0, 0)),
        ),
        compiler_params=pltpu.CompilerParams(
            dimension_semantics=("parallel",)),     # v7x: one image per TensorCore
    )(x, *consts)

    return out.reshape(B, C1, H, W)


def backbone1_reference(x_nchw, folded):
    """Pure-JAX NCHW reference with the same folded-BN math."""
    w1f, b0, wb1f, b1, w3taps, b2, wb3f, b3 = folded
    B, C_in, H, W = x_nchw.shape
    hi = jax.lax.Precision.HIGHEST

    def bias(b):
        return b.reshape(1, -1, 1, 1)

    x = x_nchw.astype(jnp.float32)
    t0 = jnp.maximum(jnp.einsum('oc,bchw->bohw', w1f, x, precision=hi) + bias(b0), 0.0)
    t1 = jnp.maximum(jnp.einsum('oc,bchw->bohw', wb1f, t0, precision=hi) + bias(b1), 0.0)

    tp = jnp.pad(t1, ((0, 0), (0, 0), (1, 1), (1, 1)))
    acc = jnp.zeros_like(t1)
    for kh in range(3):
        for kw in range(3):
            acc = acc + jnp.einsum('oc,bchw->bohw', w3taps[kh * 3 + kw],
                                   tp[:, :, kh:kh + H, kw:kw + W], precision=hi)
    t2 = jnp.maximum(acc + bias(b2), 0.0)

    t3 = jnp.einsum('oc,bchw->bohw', wb3f, t2, precision=hi) + bias(b3)
    return jnp.maximum(t3 + t0, 0.0)


if __name__ == "__main__":
    key = jax.random.PRNGKey(0)
    B, C_in, H, W = 2, 3, 16, 16
    C1, Cw = 20, 10                      # backbone1: conv1 3->20; Bottleneck width 10
    eps = 1e-5
    ks = jax.random.split(key, 5)

    x = jax.random.normal(ks[0], (B, C_in, H, W), jnp.float32)

    def kaiming(k, shape, fan_in):       # kaiming_normal_: std = sqrt(2 / fan_in)
        return jax.random.normal(k, shape, jnp.float32) * np.sqrt(2.0 / fan_in)

    # conv weights: 1x1 convs as (C_out, C_in); the 3x3 conv as 9 taps
    # (kh*3+kw, C_out, C_in) == torch weight (O, I, 3, 3) permuted to (3*3, O, I).
    w1 = kaiming(ks[1], (C1, C_in), C_in)          # conv1: 1x1, 3 -> 20
    wb1 = kaiming(ks[2], (Cw, C1), C1)             # bottleneck conv1: 1x1, 20 -> 10
    w3 = kaiming(ks[3], (9, Cw, Cw), Cw * 9)       # bottleneck conv2: 3x3, 10 -> 10
    wb3 = kaiming(ks[4], (C1, Cw), Cw)             # bottleneck conv3: 1x1, 10 -> 20

    def bn_eval(C):                      # gamma=1, beta=0, running stats (0, 1)
        return (jnp.ones((C,), jnp.float32), jnp.zeros((C,), jnp.float32),
                jnp.zeros((C,), jnp.float32), jnp.ones((C,), jnp.float32))

    w1f, b0 = fold_bn(w1, bn_eval(C1), eps)
    wb1f, b1 = fold_bn(wb1, bn_eval(Cw), eps)
    w3f, b2 = fold_bn(w3, bn_eval(Cw), eps)
    wb3f, b3 = fold_bn(wb3, bn_eval(C1), eps)
    folded = (w1f, b0, wb1f, b1, w3f, b2, wb3f, b3)

    out = backbone1_forward(x, folded)
    out = jax.block_until_ready(out)

    ref = backbone1_reference(x, folded)
    np.testing.assert_allclose(np.asarray(out), np.asarray(ref), rtol=5e-3, atol=5e-3)

    print("KERNEL_OK")
</pallas_src>

<mosaic_0001>
module attributes {stable_mosaic.version = 11 : i64} {
  func.func @kernel(%arg0: i32, %arg1: memref<1x3x256xf32, #tpu.memory_space<vmem>>, %arg2: memref<9x1x256xf32, #tpu.memory_space<vmem>>, %arg3: memref<20x3xf32, #tpu.memory_space<vmem>>, %arg4: memref<20x1xf32, #tpu.memory_space<vmem>>, %arg5: memref<10x20xf32, #tpu.memory_space<vmem>>, %arg6: memref<10x1xf32, #tpu.memory_space<vmem>>, %arg7: memref<10x90xf32, #tpu.memory_space<vmem>>, %arg8: memref<10x1xf32, #tpu.memory_space<vmem>>, %arg9: memref<20x10xf32, #tpu.memory_space<vmem>>, %arg10: memref<20x1xf32, #tpu.memory_space<vmem>>, %arg11: memref<1x20x256xf32, #tpu.memory_space<vmem>>) attributes {dimension_semantics = [#tpu.dimension_semantics<parallel>], iteration_bounds = array<i64: 2>, scalar_prefetch = 0 : i64, scratch_operands = 0 : i64, tpu.core_type = #tpu.core_type<tc>, window_params = [{transform_indices = @transform_0, window_bounds = array<i64: 1, 3, 256>}, {pipeline_mode = #tpu.pipeline_mode<synchronous>, transform_indices = @transform_1, window_bounds = array<i64: 9, 1, 256>}, {pipeline_mode = #tpu.pipeline_mode<synchronous>, transform_indices = @transform_2, window_bounds = array<i64: 20, 3>}, {pipeline_mode = #tpu.pipeline_mode<synchronous>, transform_indices = @transform_3, window_bounds = array<i64: 20, 1>}, {pipeline_mode = #tpu.pipeline_mode<synchronous>, transform_indices = @transform_4, window_bounds = array<i64: 10, 20>}, {pipeline_mode = #tpu.pipeline_mode<synchronous>, transform_indices = @transform_5, window_bounds = array<i64: 10, 1>}, {pipeline_mode = #tpu.pipeline_mode<synchronous>, transform_indices = @transform_6, window_bounds = array<i64: 10, 90>}, {pipeline_mode = #tpu.pipeline_mode<synchronous>, transform_indices = @transform_7, window_bounds = array<i64: 10, 1>}, {pipeline_mode = #tpu.pipeline_mode<synchronous>, transform_indices = @transform_8, window_bounds = array<i64: 20, 10>}, {pipeline_mode = #tpu.pipeline_mode<synchronous>, transform_indices = @transform_9, window_bounds = array<i64: 20, 1>}, {transform_indices = @transform_10, window_bounds = array<i64: 1, 20, 256>}]} {
    %c0 = arith.constant 0 : index
    %c0_0 = arith.constant 0 : index
    %c0_1 = arith.constant 0 : index
    %0 = vector.load %arg1[%c0, %c0_0, %c0_1] : memref<1x3x256xf32, #tpu.memory_space<vmem>>, vector<1x3x256xf32>
    %1 = vector.shape_cast %0 : vector<1x3x256xf32> to vector<3x256xf32>
    %c0_2 = arith.constant 0 : index
    %c0_3 = arith.constant 0 : index
    %2 = vector.load %arg3[%c0_2, %c0_3] : memref<20x3xf32, #tpu.memory_space<vmem>>, vector<20x3xf32>
    %cst = arith.constant dense<0.000000e+00> : vector<20x256xf32>
    %3 = tpu.matmul %2, %1, %cst {dimension_numbers = #tpu.dot_dimension_numbers<[1], [0], [0], [1], [0, 0, 1, 1], [], []>} : vector<20x3xf32>, vector<3x256xf32>, vector<20x256xf32> -> vector<20x256xf32>
    %c0_4 = arith.constant 0 : index
    %c0_5 = arith.constant 0 : index
    %4 = vector.load %arg4[%c0_4, %c0_5] : memref<20x1xf32, #tpu.memory_space<vmem>>, vector<20x1xf32>
    %5 = vector.broadcast %4 : vector<20x1xf32> to vector<20x256xf32>
    %6 = arith.addf %3, %5 : vector<20x256xf32>
    %cst_6 = arith.constant 0.000000e+00 : f32
    %7 = vector.broadcast %cst_6 : f32 to vector<20x256xf32>
    %8 = arith.maximumf %6, %7 : vector<20x256xf32>
    %c0_7 = arith.constant 0 : index
    %c0_8 = arith.constant 0 : index
    %9 = vector.load %arg5[%c0_7, %c0_8] : memref<10x20xf32, #tpu.memory_space<vmem>>, vector<10x20xf32>
    %cst_9 = arith.constant dense<0.000000e+00> : vector<10x256xf32>
    %10 = tpu.matmul %9, %8, %cst_9 {dimension_numbers = #tpu.dot_dimension_numbers<[1], [0], [0], [1], [0, 0, 1, 1], [], []>} : vector<10x20xf32>, vector<20x256xf32>, vector<10x256xf32> -> vector<10x256xf32>
    %c0_10 = arith.constant 0 : index
    %c0_11 = arith.constant 0 : index
    %11 = vector.load %arg6[%c0_10, %c0_11] : memref<10x1xf32, #tpu.memory_space<vmem>>, vector<10x1xf32>
    %12 = vector.broadcast %11 : vector<10x1xf32> to vector<10x256xf32>
    %13 = arith.addf %10, %12 : vector<10x256xf32>
    %cst_12 = arith.constant 0.000000e+00 : f32
    %14 = vector.broadcast %cst_12 : f32 to vector<10x256xf32>
    %15 = arith.maximumf %13, %14 : vector<10x256xf32>
    %c17_i32 = arith.constant 17 : i32
    %16 = tpu.dynamic_rotate %15 by %c17_i32 dim 1 : vector<10x256xf32>, i32 -> vector<10x256xf32>
    %c0_13 = arith.constant 0 : index
    %c0_14 = arith.constant 0 : index
    %c0_15 = arith.constant 0 : index
    %17 = vector.load %arg2[%c0_13, %c0_14, %c0_15] : memref<9x1x256xf32, #tpu.memory_space<vmem>>, vector<1x1x256xf32>
    %18 = vector.shape_cast %17 : vector<1x1x256xf32> to vector<1x256xf32>
    %19 = vector.broadcast %18 : vector<1x256xf32> to vector<10x256xf32>
    %20 = arith.mulf %16, %19 : vector<10x256xf32>
    %c16_i32 = arith.constant 16 : i32
    %21 = tpu.dynamic_rotate %15 by %c16_i32 dim 1 : vector<10x256xf32>, i32 -> vector<10x256xf32>
    %c1 = arith.constant 1 : index
    %c0_16 = arith.constant 0 : index
    %c0_17 = arith.constant 0 : index
    %22 = vector.load %arg2[%c1, %c0_16, %c0_17] : memref<9x1x256xf32, #tpu.memory_space<vmem>>, vector<1x1x256xf32>
    %23 = vector.shape_cast %22 : vector<1x1x256xf32> to vector<1x256xf32>
    %24 = vector.broadcast %23 : vector<1x256xf32> to vector<10x256xf32>
    %25 = arith.mulf %21, %24 : vector<10x256xf32>
    %c15_i32 = arith.constant 15 : i32
    %26 = tpu.dynamic_rotate %15 by %c15_i32 dim 1 : vector<10x256xf32>, i32 -> vector<10x256xf32>
    %c2 = arith.constant 2 : index
    %c0_18 = arith.constant 0 : index
    %c0_19 = arith.constant 0 : index
    %27 = vector.load %arg2[%c2, %c0_18, %c0_19] : memref<9x1x256xf32, #tpu.memory_space<vmem>>, vector<1x1x256xf32>
    %28 = vector.shape_cast %27 : vector<1x1x256xf32> to vector<1x256xf32>
    %29 = vector.broadcast %28 : vector<1x256xf32> to vector<10x256xf32>
    %30 = arith.mulf %26, %29 : vector<10x256xf32>
    %c1_i32 = arith.constant 1 : i32
    %31 = tpu.dynamic_rotate %15 by %c1_i32 dim 1 : vector<10x256xf32>, i32 -> vector<10x256xf32>
    %c3 = arith.constant 3 : index
    %c0_20 = arith.constant 0 : index
    %c0_21 = arith.constant 0 : index
    %32 = vector.load %arg2[%c3, %c0_20, %c0_21] : memref<9x1x256xf32, #tpu.memory_space<vmem>>, vector<1x1x256xf32>
    %33 = vector.shape_cast %32 : vector<1x1x256xf32> to vector<1x256xf32>
    %34 = vector.broadcast %33 : vector<1x256xf32> to vector<10x256xf32>
    %35 = arith.mulf %31, %34 : vector<10x256xf32>
    %c4 = arith.constant 4 : index
    %c0_22 = arith.constant 0 : index
    %c0_23 = arith.constant 0 : index
    %36 = vector.load %arg2[%c4, %c0_22, %c0_23] : memref<9x1x256xf32, #tpu.memory_space<vmem>>, vector<1x1x256xf32>
    %37 = vector.shape_cast %36 : vector<1x1x256xf32> to vector<1x256xf32>
    %38 = vector.broadcast %37 : vector<1x256xf32> to vector<10x256xf32>
    %39 = arith.mulf %15, %38 : vector<10x256xf32>
    %c255_i32 = arith.constant 255 : i32
    %40 = tpu.dynamic_rotate %15 by %c255_i32 dim 1 : vector<10x256xf32>, i32 -> vector<10x256xf32>
    %c5 = arith.constant 5 : index
    %c0_24 = arith.constant 0 : index
    %c0_25 = arith.constant 0 : index
    %41 = vector.load %arg2[%c5, %c0_24, %c0_25] : memref<9x1x256xf32, #tpu.memory_space<vmem>>, vector<1x1x256xf32>
    %42 = vector.shape_cast %41 : vector<1x1x256xf32> to vector<1x256xf32>
    %43 = vector.broadcast %42 : vector<1x256xf32> to vector<10x256xf32>
    %44 = arith.mulf %40, %43 : vector<10x256xf32>
    %c241_i32 = arith.constant 241 : i32
    %45 = tpu.dynamic_rotate %15 by %c241_i32 dim 1 : vector<10x256xf32>, i32 -> vector<10x256xf32>
    %c6 = arith.constant 6 : index
    %c0_26 = arith.constant 0 : index
    %c0_27 = arith.constant 0 : index
    %46 = vector.load %arg2[%c6, %c0_26, %c0_27] : memref<9x1x256xf32, #tpu.memory_space<vmem>>, vector<1x1x256xf32>
    %47 = vector.shape_cast %46 : vector<1x1x256xf32> to vector<1x256xf32>
    %48 = vector.broadcast %47 : vector<1x256xf32> to vector<10x256xf32>
    %49 = arith.mulf %45, %48 : vector<10x256xf32>
    %c240_i32 = arith.constant 240 : i32
    %50 = tpu.dynamic_rotate %15 by %c240_i32 dim 1 : vector<10x256xf32>, i32 -> vector<10x256xf32>
    %c7 = arith.constant 7 : index
    %c0_28 = arith.constant 0 : index
    %c0_29 = arith.constant 0 : index
    %51 = vector.load %arg2[%c7, %c0_28, %c0_29] : memref<9x1x256xf32, #tpu.memory_space<vmem>>, vector<1x1x256xf32>
    %52 = vector.shape_cast %51 : vector<1x1x256xf32> to vector<1x256xf32>
    %53 = vector.broadcast %52 : vector<1x256xf32> to vector<10x256xf32>
    %54 = arith.mulf %50, %53 : vector<10x256xf32>
    %c239_i32 = arith.constant 239 : i32
    %55 = tpu.dynamic_rotate %15 by %c239_i32 dim 1 : vector<10x256xf32>, i32 -> vector<10x256xf32>
    %c8 = arith.constant 8 : index
    %c0_30 = arith.constant 0 : index
    %c0_31 = arith.constant 0 : index
    %56 = vector.load %arg2[%c8, %c0_30, %c0_31] : memref<9x1x256xf32, #tpu.memory_space<vmem>>, vector<1x1x256xf32>
    %57 = vector.shape_cast %56 : vector<1x1x256xf32> to vector<1x256xf32>
    %58 = vector.broadcast %57 : vector<1x256xf32> to vector<10x256xf32>
    %59 = arith.mulf %55, %58 : vector<10x256xf32>
    %60 = tpu.concatenate %20, %25, %30, %35, %39, %44, %49, %54, %59 in 0 : vector<10x256xf32>, vector<10x256xf32>, vector<10x256xf32>, vector<10x256xf32>, vector<10x256xf32>, vector<10x256xf32>, vector<10x256xf32>, vector<10x256xf32>, vector<10x256xf32> -> vector<90x256xf32>
    %c0_32 = arith.constant 0 : index
    %c0_33 = arith.constant 0 : index
    %61 = vector.load %arg7[%c0_32, %c0_33] : memref<10x90xf32, #tpu.memory_space<vmem>>, vector<10x90xf32>
    %cst_34 = arith.constant dense<0.000000e+00> : vector<10x256xf32>
    %62 = tpu.matmul %61, %60, %cst_34 {dimension_numbers = #tpu.dot_dimension_numbers<[1], [0], [0], [1], [0, 0, 1, 1], [], []>} : vector<10x90xf32>, vector<90x256xf32>, vector<10x256xf32> -> vector<10x256xf32>
    %c0_35 = arith.constant 0 : index
    %c0_36 = arith.constant 0 : index
    %63 = vector.load %arg8[%c0_35, %c0_36] : memref<10x1xf32, #tpu.memory_space<vmem>>, vector<10x1xf32>
    %64 = vector.broadcast %63 : vector<10x1xf32> to vector<10x256xf32>
    %65 = arith.addf %62, %64 : vector<10x256xf32>
    %cst_37 = arith.constant 0.000000e+00 : f32
    %66 = vector.broadcast %cst_37 : f32 to vector<10x256xf32>
    %67 = arith.maximumf %65, %66 : vector<10x256xf32>
    %c0_38 = arith.constant 0 : index
    %c0_39 = arith.constant 0 : index
    %68 = vector.load %arg9[%c0_38, %c0_39] : memref<20x10xf32, #tpu.memory_space<vmem>>, vector<20x10xf32>
    %cst_40 = arith.constant dense<0.000000e+00> : vector<20x256xf32>
    %69 = tpu.matmul %68, %67, %cst_40 {dimension_numbers = #tpu.dot_dimension_numbers<[1], [0], [0], [1], [0, 0, 1, 1], [], []>} : vector<20x10xf32>, vector<10x256xf32>, vector<20x256xf32> -> vector<20x256xf32>
    %c0_41 = arith.constant 0 : index
    %c0_42 = arith.constant 0 : index
    %70 = vector.load %arg10[%c0_41, %c0_42] : memref<20x1xf32, #tpu.memory_space<vmem>>, vector<20x1xf32>
    %71 = vector.broadcast %70 : vector<20x1xf32> to vector<20x256xf32>
    %72 = arith.addf %69, %71 : vector<20x256xf32>
    %73 = arith.addf %72, %8 : vector<20x256xf32>
    %cst_43 = arith.constant 0.000000e+00 : f32
    %74 = vector.broadcast %cst_43 : f32 to vector<20x256xf32>
    %75 = arith.maximumf %73, %74 : vector<20x256xf32>
    %c0_44 = arith.constant 0 : index
    %c0_45 = arith.constant 0 : index
    %c0_46 = arith.constant 0 : index
    %76 = vector.load %arg11[%c0_44, %c0_45, %c0_46] : memref<1x20x256xf32, #tpu.memory_space<vmem>>, vector<1x20x256xf32>
    %77 = vector.shape_cast %76 : vector<1x20x256xf32> to vector<20x256xf32>
    %78 = vector.shape_cast %75 : vector<20x256xf32> to vector<1x20x256xf32>
    tpu.vector_store %arg11[%c0_44, %c0_45, %c0_46], %78 {strides = array<i32>} : memref<1x20x256xf32, #tpu.memory_space<vmem>>, vector<1x20x256xf32>,
    return
  }
  func.func @transform_0(%arg0: i32) -> (i32, i32, i32) {
    %c0_i32 = arith.constant 0 : i32
    %c0_i32_0 = arith.constant 0 : i32
    %c0_i32_1 = arith.constant 0 : i32
    return %arg0, %c0_i32, %c0_i32_0 : i32, i32, i32
  }
  func.func @transform_1(%arg0: i32) -> (i32, i32, i32) {
    %c0_i32 = arith.constant 0 : i32
    %c0_i32_0 = arith.constant 0 : i32
    %c0_i32_1 = arith.constant 0 : i32
    %c0_i32_2 = arith.constant 0 : i32
    return %c0_i32, %c0_i32_0, %c0_i32_1 : i32, i32, i32
  }
  func.func @transform_2(%arg0: i32) -> (i32, i32) {
    %c0_i32 = arith.constant 0 : i32
    %c0_i32_0 = arith.constant 0 : i32
    %c0_i32_1 = arith.constant 0 : i32
    return %c0_i32, %c0_i32_0 : i32, i32
  }
  func.func @transform_3(%arg0: i32) -> (i32, i32) {
    %c0_i32 = arith.constant 0 : i32
    %c0_i32_0 = arith.constant 0 : i32
    %c0_i32_1 = arith.constant 0 : i32
    return %c0_i32, %c0_i32_0 : i32, i32
  }
  func.func @transform_4(%arg0: i32) -> (i32, i32) {
    %c0_i32 = arith.constant 0 : i32
    %c0_i32_0 = arith.constant 0 : i32
    %c0_i32_1 = arith.constant 0 : i32
    return %c0_i32, %c0_i32_0 : i32, i32
  }
  func.func @transform_5(%arg0: i32) -> (i32, i32) {
    %c0_i32 = arith.constant 0 : i32
    %c0_i32_0 = arith.constant 0 : i32
    %c0_i32_1 = arith.constant 0 : i32
    return %c0_i32, %c0_i32_0 : i32, i32
  }
  func.func @transform_6(%arg0: i32) -> (i32, i32) {
    %c0_i32 = arith.constant 0 : i32
    %c0_i32_0 = arith.constant 0 : i32
    %c0_i32_1 = arith.constant 0 : i32
    return %c0_i32, %c0_i32_0 : i32, i32
  }
  func.func @transform_7(%arg0: i32) -> (i32, i32) {
    %c0_i32 = arith.constant 0 : i32
    %c0_i32_0 = arith.constant 0 : i32
    %c0_i32_1 = arith.constant 0 : i32
    return %c0_i32, %c0_i32_0 : i32, i32
  }
  func.func @transform_8(%arg0: i32) -> (i32, i32) {
    %c0_i32 = arith.constant 0 : i32
    %c0_i32_0 = arith.constant 0 : i32
    %c0_i32_1 = arith.constant 0 : i32
    return %c0_i32, %c0_i32_0 : i32, i32
  }
  func.func @transform_9(%arg0: i32) -> (i32, i32) {
    %c0_i32 = arith.constant 0 : i32
    %c0_i32_0 = arith.constant 0 : i32
    %c0_i32_1 = arith.constant 0 : i32
    return %c0_i32, %c0_i32_0 : i32, i32
  }
  func.func @transform_10(%arg0: i32) -> (i32, i32, i32) {
    %c0_i32 = arith.constant 0 : i32
    %c0_i32_0 = arith.constant 0 : i32
    %c0_i32_1 = arith.constant 0 : i32
    return %arg0, %c0_i32, %c0_i32_0 : i32, i32, i32
  }
}

</mosaic_0001>

<llo_original>
// kernel: tpu_custom_call.1
$region0: #{tpu_custom_call.1}
  #allocation0 [shape = 'u32[]', space=smem, size = 0x4, offset = 0x4, fixed_abs, tag = 'smem constant byte address 0x4 - core index']
  #allocation1 [shape = 'u32[144,128]{1,0:T(1,128)}', space=vmem, size = 0x12000, scoped, tag = 'internal scratch']
  %s0 = inlined_call_operand.vmem [shape: f32[2,3,256], index: 0, kind: input, shape index: {}]
  %s1 = inlined_call_operand.vmem [shape: f32[9,1,256], index: 1, kind: input, shape index: {}]
  %s2 = inlined_call_operand.vmem [shape: f32[20,3], index: 2, kind: input, shape index: {}]
  %s3 = inlined_call_operand.vmem [shape: f32[20,1], index: 3, kind: input, shape index: {}]
  %s4 = inlined_call_operand.vmem [shape: f32[10,20], index: 4, kind: input, shape index: {}]
  %s5 = inlined_call_operand.vmem [shape: f32[10,1], index: 5, kind: input, shape index: {}]
  %s6 = inlined_call_operand.vmem [shape: f32[10,90], index: 6, kind: input, shape index: {}]
  %s7 = inlined_call_operand.vmem [shape: f32[10,1], index: 7, kind: input, shape index: {}]
  %s8 = inlined_call_operand.vmem [shape: f32[20,10], index: 8, kind: input, shape index: {}]
  %s9 = inlined_call_operand.vmem [shape: f32[20,1], index: 9, kind: input, shape index: {}]
  %s10 = inlined_call_operand.vmem [shape: f32[2,20,256], index: 10, kind: output, shape index: {}]
  %s11 = sld [smem:[#allocation0]]
  $region73: #{tpu_custom_call.1} parent=0
    _
  %s13 = ssub.s32 1, %s11
  %s14 = scalar_select 0, %s13, %s11
  loop: start=0, step=1, limit=4
  $region2: #{tpu_custom_call.1} parent=0 // loop_pre_header
    _
  $region3: #{tpu_custom_call.1} parent=0 // loop_header
    %s16 = sphi 0, %s20
    %p17 = scmp.ge.s32.totalorder %s16, 4
    %s26 = sphi 0, %s28
    %s29 = sphi 0, %s26
    %s30 = sphi 0, %s29
    %s46 = sphi 0, %s30
    %s50 = sphi 0, %s50
    %s52 = sphi 0, %s50
    %s53 = sphi 0, %s52
    %s67 = sphi 0, %s53
    %s71 = sphi 0, %s71
    %s73 = sphi 0, %s71
    %s74 = sphi 0, %s73
    %s88 = sphi 0, %s74
    %s92 = sphi 0, %s92
    %s94 = sphi 0, %s92
    %s95 = sphi 0, %s94
    %s109 = sphi 0, %s95
    %s113 = sphi 0, %s113
    %s115 = sphi 0, %s113
    %s116 = sphi 0, %s115
    %s130 = sphi 0, %s116
    %s134 = sphi 0, %s134
    %s136 = sphi 0, %s134
    %s137 = sphi 0, %s136
    %s151 = sphi 0, %s137
    %s155 = sphi 0, %s155
    %s157 = sphi 0, %s155
    %s158 = sphi 0, %s157
    %s172 = sphi 0, %s158
    %s176 = sphi 0, %s176
    %s178 = sphi 0, %s176
    %s179 = sphi 0, %s178
    %s193 = sphi 0, %s179
    %s197 = sphi 0, %s197
    %s199 = sphi 0, %s197
    %s200 = sphi 0, %s199
    %s214 = sphi 0, %s200
    %s218 = sphi 0, %s218
    %s220 = sphi 0, %s218
    %s221 = sphi 0, %s220
    %s235 = sphi 0, %s221
    %s241 = sphi 0, %s243
    %s244 = sphi 0, %s241
    %s245 = sphi 0, %s244
    %s261 = sphi 0, %s245
  $region4: #{tpu_custom_call.1} parent=0 // loop_header_branch
    %19 = sbr.rel (%p17) target = $region8
  $region5: #{tpu_custom_call.1} parent=0 // loop_body
    %s21 = ssub.s32 %s16, 1
    %s22 = ssub.s32 %s16, 2
    %s23 = sadd.s32 %s16, 1
    %s24 = ssub.s32 %s16, %s23
    %p25 = scmp.eq.s32.totalorder %s24, 0
    %s27 = sadd.s32 %s26, 1
    %s28 = scalar_select %p25, %s26, %s27
    %p31 = pneg %p25
    %p32 = scmp.eq.s32.totalorder %s16, 1
    %p33 = por %p31, %p32
    %p34 = scmp.ne.s32.totalorder %s26, %s29
    %p35 = scmp.eq.s32.totalorder %s16, 0
    %p36 = por %p34, %p35
    %p37 = scmp.ne.s32.totalorder %s26, %s29
    %p38 = scmp.eq.s32.totalorder %s21, 1
    %p39 = por %p37, %p38
    %p40 = scmp.ne.s32.totalorder %s29, %s30
    %p41 = scmp.eq.s32.totalorder %s21, 0
    %p42 = por %p40, %p41
    %p43 = scmp.ne.s32.totalorder %s29, %s30
    %p44 = scmp.eq.s32.totalorder %s22, 1
    %p45 = por %p43, %p44
    %p47 = scmp.ne.s32.totalorder %s30, %s46
    %p48 = scmp.eq.s32.totalorder %s22, 0
    %p49 = por %p47, %p48
    %s51 = sadd.s32 %s50, 1
    %p54 = scmp.eq.s32.totalorder %s16, 1
    %p55 = scmp.ne.s32.totalorder %s50, %s52
    %p56 = scmp.eq.s32.totalorder %s16, 0
    %p57 = por %p55, %p56
    %p58 = scmp.ne.s32.totalorder %s50, %s52
    %p59 = scmp.eq.s32.totalorder %s21, 1
    %p60 = por %p58, %p59
    %p61 = scmp.ne.s32.totalorder %s52, %s53
    %p62 = scmp.eq.s32.totalorder %s21, 0
    %p63 = por %p61, %p62
    %p64 = scmp.ne.s32.totalorder %s52, %s53
    %p65 = scmp.eq.s32.totalorder %s22, 1
    %p66 = por %p64, %p65
    %p68 = scmp.ne.s32.totalorder %s53, %s67
    %p69 = scmp.eq.s32.totalorder %s22, 0
    %p70 = por %p68, %p69
    %s72 = sadd.s32 %s71, 1
    %p75 = scmp.eq.s32.totalorder %s16, 1
    %p76 = scmp.ne.s32.totalorder %s71, %s73
    %p77 = scmp.eq.s32.totalorder %s16, 0
    %p78 = por %p76, %p77
    %p79 = scmp.ne.s32.totalorder %s71, %s73
    %p80 = scmp.eq.s32.totalorder %s21, 1
    %p81 = por %p79, %p80
    %p82 = scmp.ne.s32.totalorder %s73, %s74
    %p83 = scmp.eq.s32.totalorder %s21, 0
    %p84 = por %p82, %p83
    %p85 = scmp.ne.s32.totalorder %s73, %s74
    %p86 = scmp.eq.s32.totalorder %s22, 1
    %p87 = por %p85, %p86
    %p89 = scmp.ne.s32.totalorder %s74, %s88
    %p90 = scmp.eq.s32.totalorder %s22, 0
    %p91 = por %p89, %p90
    %s93 = sadd.s32 %s92, 1
    %p96 = scmp.eq.s32.totalorder %s16, 1
    %p97 = scmp.ne.s32.totalorder %s92, %s94
    %p98 = scmp.eq.s32.totalorder %s16, 0
    %p99 = por %p97, %p98
    %p100 = scmp.ne.s32.totalorder %s92, %s94
    %p101 = scmp.eq.s32.totalorder %s21, 1
    %p102 = por %p100, %p101
    %p103 = scmp.ne.s32.totalorder %s94, %s95
    %p104 = scmp.eq.s32.totalorder %s21, 0
    %p105 = por %p103, %p104
    %p106 = scmp.ne.s32.totalorder %s94, %s95
    %p107 = scmp.eq.s32.totalorder %s22, 1
    %p108 = por %p106, %p107
    %p110 = scmp.ne.s32.totalorder %s95, %s109
    %p111 = scmp.eq.s32.totalorder %s22, 0
    %p112 = por %p110, %p111
    %s114 = sadd.s32 %s113, 1
    %p117 = scmp.eq.s32.totalorder %s16, 1
    %p118 = scmp.ne.s32.totalorder %s113, %s115
    %p119 = scmp.eq.s32.totalorder %s16, 0
    %p120 = por %p118, %p119
    %p121 = scmp.ne.s32.totalorder %s113, %s115
    %p122 = scmp.eq.s32.totalorder %s21, 1
    %p123 = por %p121, %p122
    %p124 = scmp.ne.s32.totalorder %s115, %s116
    %p125 = scmp.eq.s32.totalorder %s21, 0
    %p126 = por %p124, %p125
    %p127 = scmp.ne.s32.totalorder %s115, %s116
    %p128 = scmp.eq.s32.totalorder %s22, 1
    %p129 = por %p127, %p128
    %p131 = scmp.ne.s32.totalorder %s116, %s130
    %p132 = scmp.eq.s32.totalorder %s22, 0
    %p133 = por %p131, %p132
    %s135 = sadd.s32 %s134, 1
    %p138 = scmp.eq.s32.totalorder %s16, 1
    %p139 = scmp.ne.s32.totalorder %s134, %s136
    %p140 = scmp.eq.s32.totalorder %s16, 0
    %p141 = por %p139, %p140
    %p142 = scmp.ne.s32.totalorder %s134, %s136
    %p143 = scmp.eq.s32.totalorder %s21, 1
    %p144 = por %p142, %p143
    %p145 = scmp.ne.s32.totalorder %s136, %s137
    %p146 = scmp.eq.s32.totalorder %s21, 0
    %p147 = por %p145, %p146
    %p148 = scmp.ne.s32.totalorder %s136, %s137
    %p149 = scmp.eq.s32.totalorder %s22, 1
    %p150 = por %p148, %p149
    %p152 = scmp.ne.s32.totalorder %s137, %s151
    %p153 = scmp.eq.s32.totalorder %s22, 0
    %p154 = por %p152, %p153
    %s156 = sadd.s32 %s155, 1
    %p159 = scmp.eq.s32.totalorder %s16, 1
    %p160 = scmp.ne.s32.totalorder %s155, %s157
    %p161 = scmp.eq.s32.totalorder %s16, 0
    %p162 = por %p160, %p161
    %p163 = scmp.ne.s32.totalorder %s155, %s157
    %p164 = scmp.eq.s32.totalorder %s21, 1
    %p165 = por %p163, %p164
    %p166 = scmp.ne.s32.totalorder %s157, %s158
    %p167 = scmp.eq.s32.totalorder %s21, 0
    %p168 = por %p166, %p167
    %p169 = scmp.ne.s32.totalorder %s157, %s158
    %p170 = scmp.eq.s32.totalorder %s22, 1
    %p171 = por %p169, %p170
    %p173 = scmp.ne.s32.totalorder %s158, %s172
    %p174 = scmp.eq.s32.totalorder %s22, 0
    %p175 = por %p173, %p174
    %s177 = sadd.s32 %s176, 1
    %p180 = scmp.eq.s32.totalorder %s16, 1
    %p181 = scmp.ne.s32.totalorder %s176, %s178
    %p182 = scmp.eq.s32.totalorder %s16, 0
    %p183 = por %p181, %p182
    %p184 = scmp.ne.s32.totalorder %s176, %s178
    %p185 = scmp.eq.s32.totalorder %s21, 1
    %p186 = por %p184, %p185
    %p187 = scmp.ne.s32.totalorder %s178, %s179
    %p188 = scmp.eq.s32.totalorder %s21, 0
    %p189 = por %p187, %p188
    %p190 = scmp.ne.s32.totalorder %s178, %s179
    %p191 = scmp.eq.s32.totalorder %s22, 1
    %p192 = por %p190, %p191
    %p194 = scmp.ne.s32.totalorder %s179, %s193
    %p195 = scmp.eq.s32.totalorder %s22, 0
    %p196 = por %p194, %p195
    %s198 = sadd.s32 %s197, 1
    %p201 = scmp.eq.s32.totalorder %s16, 1
    %p202 = scmp.ne.s32.totalorder %s197, %s199
    %p203 = scmp.eq.s32.totalorder %s16, 0
    %p204 = por %p202, %p203
    %p205 = scmp.ne.s32.totalorder %s197, %s199
    %p206 = scmp.eq.s32.totalorder %s21, 1
    %p207 = por %p205, %p206
    %p208 = scmp.ne.s32.totalorder %s199, %s200
    %p209 = scmp.eq.s32.totalorder %s21, 0
    %p210 = por %p208, %p209
    %p211 = scmp.ne.s32.totalorder %s199, %s200
    %p212 = scmp.eq.s32.totalorder %s22, 1
    %p213 = por %p211, %p212
    %p215 = scmp.ne.s32.totalorder %s200, %s214
    %p216 = scmp.eq.s32.totalorder %s22, 0
    %p217 = por %p215, %p216
    %s219 = sadd.s32 %s218, 1
    %p222 = scmp.eq.s32.totalorder %s16, 1
    %p223 = scmp.ne.s32.totalorder %s218, %s220
    %p224 = scmp.eq.s32.totalorder %s16, 0
    %p225 = por %p223, %p224
    %p226 = scmp.ne.s32.totalorder %s218, %s220
    %p227 = scmp.eq.s32.totalorder %s21, 1
    %p228 = por %p226, %p227
    %p229 = scmp.ne.s32.totalorder %s220, %s221
    %p230 = scmp.eq.s32.totalorder %s21, 0
    %p231 = por %p229, %p230
    %p232 = scmp.ne.s32.totalorder %s220, %s221
    %p233 = scmp.eq.s32.totalorder %s22, 1
    %p234 = por %p232, %p233
    %p236 = scmp.ne.s32.totalorder %s221, %s235
    %p237 = scmp.eq.s32.totalorder %s22, 0
    %p238 = por %p236, %p237
    %s239 = ssub.s32 %s16, %s23
    %p240 = scmp.eq.s32.totalorder %s239, 0
    %s242 = sadd.s32 %s241, 1
    %s243 = scalar_select %p240, %s241, %s242
    %p246 = pneg %p240
    %p247 = scmp.eq.s32.totalorder %s16, 1
    %p248 = por %p246, %p247
    %p249 = scmp.ne.s32.totalorder %s241, %s244
    %p250 = scmp.eq.s32.totalorder %s16, 0
    %p251 = por %p249, %p250
    %p252 = scmp.ne.s32.totalorder %s241, %s244
    %p253 = scmp.eq.s32.totalorder %s21, 1
    %p254 = por %p252, %p253
    %p255 = scmp.ne.s32.totalorder %s244, %s245
    %p256 = scmp.eq.s32.totalorder %s21, 0
    %p257 = por %p255, %p256
    %p258 = scmp.ne.s32.totalorder %s244, %s245
    %p259 = scmp.eq.s32.totalorder %s22, 1
    %p260 = por %p258, %p259
    %p262 = scmp.ne.s32.totalorder %s245, %s261
    %p263 = scmp.eq.s32.totalorder %s22, 0
    %p264 = por %p262, %p263
    %p265 = scmp.le.s32.totalorder 1, %s16
    %p266 = scmp.lt.s32.totalorder %s16, 3
    %p267 = pnand %p265, %p266
    %p268 = pneg %p267
    // Predicated region
    $region9: #{tpu_custom_call.1} parent=5 // pred_check
      _
    $region10: #{tpu_custom_call.1} parent=5 // pred_check_branch
      %270 = sbr.rel (%p267) target = $region12
    $region11: #{tpu_custom_call.1} parent=5 // pred_region
      %s271 = ssub.s32 %s16, 1
      // Predicated region
      $region13: #{tpu_custom_call.1} parent=11 // pred_check
        %p272 = pneg %p63
      $region14: #{tpu_custom_call.1} parent=11 // pred_check_branch
        %274 = sbr.rel (%p272) target = $region16
      $region15: #{tpu_custom_call.1} parent=11 // pred_region
        _
      $region16: #{tpu_custom_call.1} parent=11 // pred_fallthru
        _
      // Predicated region
      $region17: #{tpu_custom_call.1} parent=11 // pred_check
        %p275 = pneg %p84
      $region18: #{tpu_custom_call.1} parent=11 // pred_check_branch
        %277 = sbr.rel (%p275) target = $region20
      $region19: #{tpu_custom_call.1} parent=11 // pred_region
        _
      $region20: #{tpu_custom_call.1} parent=11 // pred_fallthru
        _
      // Predicated region
      $region21: #{tpu_custom_call.1} parent=11 // pred_check
        %p278 = pneg %p105
      $region22: #{tpu_custom_call.1} parent=11 // pred_check_branch
        %280 = sbr.rel (%p278) target = $region24
      $region23: #{tpu_custom_call.1} parent=11 // pred_region
        _
      $region24: #{tpu_custom_call.1} parent=11 // pred_fallthru
        _
      // Predicated region
      $region25: #{tpu_custom_call.1} parent=11 // pred_check
        %p281 = pneg %p126
      $region26: #{tpu_custom_call.1} parent=11 // pred_check_branch
        %283 = sbr.rel (%p281) target = $region28
      $region27: #{tpu_custom_call.1} parent=11 // pred_region
        _
      $region28: #{tpu_custom_call.1} parent=11 // pred_fallthru
        _
      // Predicated region
      $region29: #{tpu_custom_call.1} parent=11 // pred_check
        %p284 = pneg %p147
      $region30: #{tpu_custom_call.1} parent=11 // pred_check_branch
        %286 = sbr.rel (%p284) target = $region32
      $region31: #{tpu_custom_call.1} parent=11 // pred_region
        _
      $region32: #{tpu_custom_call.1} parent=11 // pred_fallthru
        _
      // Predicated region
      $region33: #{tpu_custom_call.1} parent=11 // pred_check
        %p287 = pneg %p168
      $region34: #{tpu_custom_call.1} parent=11 // pred_check_branch
        %289 = sbr.rel (%p287) target = $region36
      $region35: #{tpu_custom_call.1} parent=11 // pred_region
        _
      $region36: #{tpu_custom_call.1} parent=11 // pred_fallthru
        _
      // Predicated region
      $region37: #{tpu_custom_call.1} parent=11 // pred_check
        %p290 = pneg %p189
      $region38: #{tpu_custom_call.1} parent=11 // pred_check_branch
        %292 = sbr.rel (%p290) target = $region40
      $region39: #{tpu_custom_call.1} parent=11 // pred_region
        _
      $region40: #{tpu_custom_call.1} parent=11 // pred_fallthru
        _
      // Predicated region
      $region41: #{tpu_custom_call.1} parent=11 // pred_check
        %p293 = pneg %p210
      $region42: #{tpu_custom_call.1} parent=11 // pred_check_branch
        %295 = sbr.rel (%p293) target = $region44
      $region43: #{tpu_custom_call.1} parent=11 // pred_region
        _
      $region44: #{tpu_custom_call.1} parent=11 // pred_fallthru
        _
      // Predicated region
      $region45: #{tpu_custom_call.1} parent=11 // pred_check
        %p296 = pneg %p231
      $region46: #{tpu_custom_call.1} parent=11 // pred_check_branch
        %298 = sbr.rel (%p296) target = $region48
      $region47: #{tpu_custom_call.1} parent=11 // pred_region
        _
      $region48: #{tpu_custom_call.1} parent=11 // pred_fallthru
        _
    $region12: #{tpu_custom_call.1} parent=5 // pred_fallthru
      _
    %p299 = scmp.lt.s32.totalorder %s16, 2
    // Predicated region
    $region49: #{tpu_custom_call.1} parent=5 // pred_check
      %p300 = pneg %p299
    $region50: #{tpu_custom_call.1} parent=5 // pred_check_branch
      %302 = sbr.rel (%p300) target = $region52
    $region51: #{tpu_custom_call.1} parent=5 // pred_region
      // Predicated region
      $region53: #{tpu_custom_call.1} parent=51 // pred_check
        %p303 = pneg %p36
      $region54: #{tpu_custom_call.1} parent=51 // pred_check_branch
        %305 = sbr.rel (%p303) target = $region56
      $region55: #{tpu_custom_call.1} parent=51 // pred_region
        %p306 = scmp.lt.s32.totalorder %s16, 1
        %s307 = scalar_select %p306, %s16, 1
        %s308 = smul.addr %s307, 2
        %s309 = smul.addr %s308, 4
        %s310 = scalar_lea.vmem %s0, %s309
      $region56: #{tpu_custom_call.1} parent=51 // pred_fallthru
        _
    $region52: #{tpu_custom_call.1} parent=5 // pred_fallthru
      _
    %p311 = scmp.le.s32.totalorder 1, %s16
    %p312 = scmp.lt.s32.totalorder %s16, 3
    %p313 = pnand %p311, %p312
    %p314 = pneg %p313
    // Predicated region
    $region57: #{tpu_custom_call.1} parent=5 // pred_check
      _
    $region58: #{tpu_custom_call.1} parent=5 // pred_check_branch
      %316 = sbr.rel (%p313) target = $region60
    $region59: #{tpu_custom_call.1} parent=5 // pred_region
      %s317 = ssub.s32 %s16, 1
      %p318 = scmp.lt.s32.totalorder %s21, 1
      %s319 = scalar_select %p318, %s21, 1
      %s320 = smul.addr %s319, 2
      %s321 = smul.addr %s320, 4
      %s322 = scalar_lea.vmem %s0, %s321
      %p323 = pneg %p42
      %p324 = pneg %p39
      %p325 = pneg %p63
      %p326 = pneg %p60
      %p327 = pneg %p84
      %p328 = pneg %p81
      %p329 = pneg %p105
      %p330 = pneg %p102
      %p331 = pneg %p126
      %p332 = pneg %p123
      %p333 = pneg %p147
      %p334 = pneg %p144
      %p335 = pneg %p168
      %p336 = pneg %p165
      %p337 = pneg %p189
      %p338 = pneg %p186
      %p339 = pneg %p210
      %p340 = pneg %p207
      %p341 = pneg %p231
      %p342 = pneg %p228
      %p343 = pneg %p257
      %p344 = pneg %p254
      %p345 = scmp.lt.s32.totalorder %s21, 1
      %s346 = scalar_select %p345, %s21, 1
      %s347 = smul.addr %s346, 6
      %s348 = smul.addr %s347, 8
      %s349 = scalar_lea.vmem %s10, %s348
      %p350 = scmp.lt.s32.totalorder %s21, 1
      %s351 = scalar_select %p350, %s21, 1
      %s352 = smul.addr %s351, 2
      %s353 = smul.addr %s352, 4
      %s354 = scalar_lea.vmem %s0, %s353
      %p355 = scmp.lt.s32.totalorder %s21, 1
      %s356 = scalar_select %p355, %s21, 1
      %s357 = smul.addr %s356, 6
      %s358 = smul.addr %s357, 8
      %s359 = scalar_lea.vmem %s10, %s358
      %v360 = vld [vmem:[%s354] sm:$0x77]
      %v361 = vld [vmem:[%s2] sm:$0xff]
      %v362 = vld [vmem:[%s2 + $0x8] sm:$0xff]
      %v363 = vld [vmem:[%s2 + $0x10] sm:$0xf]
      %v364 = vld [vmem:[%s3] sm:$0xff]
      %v365 = vld [vmem:[%s3 + $0x8] sm:$0xff]
      %v366 = vld [vmem:[%s3 + $0x10] sm:$0xf]
      %368 = vset.pattern.permute.xlu0 0
      %369 = vperm.xlu0 %368, %v364
      %v370 = vpop.permute.xlu0 %369
      %373 = vset.pattern.permute.xlu0 0
      %374 = vperm.xlu0 %373, %v365
      %v375 = vpop.permute.xlu0 %374
      %378 = vset.pattern.permute.xlu0 0
      %379 = vperm.xlu0 %378, %v366
      %v380 = vpop.permute.xlu0 %379
      %v383 = vcombine.high %v360, %v360
      %vm384 = vcmask 23552
      %v386 = vsel %vm384, %v361, 0
      %v389 = vsel %vm384, %v362, 0
      %v392 = vsel %vm384, %v363, 0
      %vm394 = vcmask 1042432
      %v395 = vsel %vm394, %v360, 0
      %v397 = vsel %vm394, %v383, 0
      %399 = vmatprep.subr.mxu0 %v397
      %400 = vmatpush1.msra.mxu0 %v395
      %401 = vmatprep.subr.mxu0 0.0
      %402 = vmatpush1.msra.mxu0 0.0
      %403 = vmatprep.subr.mxu0 0.0
      %404 = vmatpush1.msra.mxu0 0.0
      %405 = vmatprep.subr.mxu0 0.0
      %406 = vmatpush1.msra.mxu0 0.0
      %407 = vmatprep.subr.mxu0 0.0
      %408 = vmatpush1.msra.mxu0 0.0
      %409 = vmatprep.subr.mxu0 0.0
      %410 = vmatpush1.msra.mxu0 0.0
      %411 = vmatprep.subr.mxu0 0.0
      %412 = vmatpush1.msra.mxu0 0.0
      %413 = vmatprep.subr.mxu0 0.0
      %414 = vmatpush1.msra.mxu0 0.0
      %415 = vmatprep.subr.mxu0 0.0
      %416 = vmatpush1.msra.mxu0 0.0
      %417 = vmatprep.subr.mxu0 0.0
      %418 = vmatpush1.msra.mxu0 0.0
      %419 = vmatprep.subr.mxu0 0.0
      %420 = vmatpush1.msra.mxu0 0.0
      %421 = vmatprep.subr.mxu0 0.0
      %422 = vmatpush1.msra.mxu0 0.0
      %423 = vmatprep.subr.mxu0 0.0
      %424 = vmatpush1.msra.mxu0 0.0
      %425 = vmatprep.subr.mxu0 0.0
      %426 = vmatpush1.msra.mxu0 0.0
      %427 = vmatprep.subr.mxu0 0.0
      %428 = vmatpush1.msra.mxu0 0.0
      %429 = vmatprep.subr.mxu0 0.0
      %430 = vmatpush1.msra.mxu0 0.0
      %431 = vmatprep.subr.mxu0 0.0
      %432 = vmatpush1.msra.mxu0 0.0
      %433 = vmatprep.subr.mxu0 0.0
      %434 = vmatpush1.msra.mxu0 0.0
      %435 = vmatprep.subr.mxu0 0.0
      %436 = vmatpush1.msra.mxu0 0.0
      %437 = vmatprep.subr.mxu0 0.0
      %438 = vmatpush1.msra.mxu0 0.0
      %439 = vmatprep.subr.mxu0 0.0
      %440 = vmatpush1.msra.mxu0 0.0
      %441 = vmatprep.subr.mxu0 0.0
      %442 = vmatpush1.msra.mxu0 0.0
      %443 = vmatprep.subr.mxu0 0.0
      %444 = vmatpush1.msra.mxu0 0.0
      %445 = vmatprep.subr.mxu0 0.0
      %446 = vmatpush1.msra.mxu0 0.0
      %447 = vmatprep.subr.mxu0 0.0
      %448 = vmatpush1.msra.mxu0 0.0
      %449 = vmatprep.subr.mxu0 0.0
      %450 = vmatpush1.msra.mxu0 0.0
      %451 = vmatprep.subr.mxu0 0.0
      %452 = vmatpush1.msra.mxu0 0.0
      %453 = vmatprep.subr.mxu0 0.0
      %454 = vmatpush1.msra.mxu0 0.0
      %455 = vmatprep.subr.mxu0 0.0
      %456 = vmatpush1.msra.mxu0 0.0
      %457 = vmatprep.subr.mxu0 0.0
      %458 = vmatpush1.msra.mxu0 0.0
      %459 = vmatprep.subr.mxu0 0.0
      %460 = vmatpush1.msra.mxu0 0.0
      %461 = vmatprep.subr.mxu0 0.0
      %462 = vmatpush1.msra.mxu0 0.0
      %463 = vmatprep.mubr.f32.mxu0 0.0
      %464 = vmatmul.mubr.f32.gmra.mrb[0].mxu0 %v386
      %v465 = vpop.f32.mrb[0].mxu0
      %v466 = vadd.f32 %v370, %v465
      %v467 = vpop.f32.mrb[0].mxu0
      %v468 = vadd.f32 %v370, %v467
      %469 = vmatprep.mubr.f32.mxu0 0.0
      %470 = vmatmul.mubr.f32.gmra.mrb[0].mxu0 %v389
      %v471 = vpop.f32.mrb[0].mxu0
      %v472 = vadd.f32 %v375, %v471
      %v473 = vpop.f32.mrb[0].mxu0
      %v474 = vadd.f32 %v375, %v473
      %475 = vmatprep.mubr.f32.mxu0 0.0
      %476 = vmatmul.mubr.f32.gmra.mrb[0].mxu0 %v392
      %v477 = vpop.f32.mrb[0].mxu0
      %v478 = vadd.f32 %v380, %v477
      %v479 = vpop.f32.mrb[0].mxu0
      %v480 = vadd.f32 %v380, %v479
      %481 = vdwg.mxu0
      %v482 = vmax.f32 %v466, 0.0
      %v483 = vmax.f32 %v468, 0.0
      %v484 = vmax.f32 %v472, 0.0
      %v485 = vmax.f32 %v474, 0.0
      %v486 = vmax.f32 %v478, 0.0
      %v487 = vmax.f32 %v480, 0.0
      %v488 = vld [vmem:[%s4] sm:$0xff]
      %v489 = vld [vmem:[%s4 + $0x8] sm:$0x3]
      %v490 = vld [vmem:[%s5] sm:$0xff]
      %v491 = vld [vmem:[%s5 + $0x8] sm:$0x3]
      %493 = vset.pattern.permute.xlu0 0
      %494 = vperm.xlu0 %493, %v490
      %v495 = vpop.permute.xlu0 %494
      %498 = vset.pattern.permute.xlu0 0
      %499 = vperm.xlu0 %498, %v491
      %v500 = vpop.permute.xlu0 %499
      %vm502 = vcmask 162816
      %v504 = vsel %vm502, %v488, 0
      %v507 = vsel %vm502, %v489, 0
      %vm509 = vcmask 1043456
      %v511 = vsel %vm509, %v486, 0
      %v514 = vsel %vm509, %v487, 0
      %516 = vmatprep.subr.mxu0 %v483
      %517 = vmatpush1.msra.mxu0 %v482
      %518 = vmatprep.subr.mxu0 %v485
      %519 = vmatpush1.msra.mxu0 %v484
      %520 = vmatprep.subr.mxu0 %v514
      %521 = vmatpush1.msra.mxu0 %v511
      %522 = vmatprep.subr.mxu0 0.0
      %523 = vmatpush1.msra.mxu0 0.0
      %524 = vmatprep.subr.mxu0 0.0
      %525 = vmatpush1.msra.mxu0 0.0
      %526 = vmatprep.subr.mxu0 0.0
      %527 = vmatpush1.msra.mxu0 0.0
      %528 = vmatprep.subr.mxu0 0.0
      %529 = vmatpush1.msra.mxu0 0.0
      %530 = vmatprep.subr.mxu0 0.0
      %531 = vmatpush1.msra.mxu0 0.0
      %532 = vmatprep.subr.mxu0 0.0
      %533 = vmatpush1.msra.mxu0 0.0
      %534 = vmatprep.subr.mxu0 0.0
      %535 = vmatpush1.msra.mxu0 0.0
      %536 = vmatprep.subr.mxu0 0.0
      %537 = vmatpush1.msra.mxu0 0.0
      %538 = vmatprep.subr.mxu0 0.0
      %539 = vmatpush1.msra.mxu0 0.0
      %540 = vmatprep.subr.mxu0 0.0
      %541 = vmatpush1.msra.mxu0 0.0
      %542 = vmatprep.subr.mxu0 0.0
      %543 = vmatpush1.msra.mxu0 0.0
      %544 = vmatprep.subr.mxu0 0.0
      %545 = vmatpush1.msra.mxu0 0.0
      %546 = vmatprep.subr.mxu0 0.0
      %547 = vmatpush1.msra.mxu0 0.0
      %548 = vmatprep.subr.mxu0 0.0
      %549 = vmatpush1.msra.mxu0 0.0
      %550 = vmatprep.subr.mxu0 0.0
      %551 = vmatpush1.msra.mxu0 0.0
      %552 = vmatprep.subr.mxu0 0.0
      %553 = vmatpush1.msra.mxu0 0.0
      %554 = vmatprep.subr.mxu0 0.0
      %555 = vmatpush1.msra.mxu0 0.0
      %556 = vmatprep.subr.mxu0 0.0
      %557 = vmatpush1.msra.mxu0 0.0
      %558 = vmatprep.subr.mxu0 0.0
      %559 = vmatpush1.msra.mxu0 0.0
      %560 = vmatprep.subr.mxu0 0.0
      %561 = vmatpush1.msra.mxu0 0.0
      %562 = vmatprep.subr.mxu0 0.0
      %563 = vmatpush1.msra.mxu0 0.0
      %564 = vmatprep.subr.mxu0 0.0
      %565 = vmatpush1.msra.mxu0 0.0
      %566 = vmatprep.subr.mxu0 0.0
      %567 = vmatpush1.msra.mxu0 0.0
      %568 = vmatprep.subr.mxu0 0.0
      %569 = vmatpush1.msra.mxu0 0.0
      %570 = vmatprep.subr.mxu0 0.0
      %571 = vmatpush1.msra.mxu0 0.0
      %572 = vmatprep.subr.mxu0 0.0
      %573 = vmatpush1.msra.mxu0 0.0
      %574 = vmatprep.subr.mxu0 0.0
      %575 = vmatpush1.msra.mxu0 0.0
      %576 = vmatprep.subr.mxu0 0.0
      %577 = vmatpush1.msra.mxu0 0.0
      %578 = vmatprep.subr.mxu0 0.0
      %579 = vmatpush1.msra.mxu0 0.0
      %580 = vmatprep.mubr.f32.mxu0 0.0
      %581 = vmatmul.mubr.f32.gmra.mrb[0].mxu0 %v504
      %v582 = vpop.f32.mrb[0].mxu0
      %v583 = vadd.f32 %v495, %v582
      %v584 = vpop.f32.mrb[0].mxu0
      %v585 = vadd.f32 %v495, %v584
      %586 = vmatprep.mubr.f32.mxu0 0.0
      %587 = vmatmul.mubr.f32.gmra.mrb[0].mxu0 %v507
      %v588 = vpop.f32.mrb[0].mxu0
      %v589 = vadd.f32 %v500, %v588
      %v590 = vpop.f32.mrb[0].mxu0
      %v591 = vadd.f32 %v500, %v590
      %592 = vdwg.mxu0
      %v593 = vmax.f32 %v583, 0.0
      %v594 = vmax.f32 %v585, 0.0
      %v595 = vmax.f32 %v589, 0.0
      %v596 = vmax.f32 %v591, 0.0
      %597 = vrot.lane.b32.xlu0 %v593, 17
      %v598 = vpop.permute.xlu0 %597
      %599 = vrot.lane.b32.xlu0 %v595, 17
      %v600 = vpop.permute.xlu0 %599
      %601 = vrot.lane.b32.xlu0 %v594, 17
      %v602 = vpop.permute.xlu0 %601
      %603 = vrot.lane.b32.xlu0 %v596, 17
      %v604 = vpop.permute.xlu0 %603
      %v605 = vlaneseq
      %v606 = vand.u32 %v605, 127
      %vm607 = vcmp.lt.s32.totalorder %v606, 17
      %v608 = vsel %vm607, %v598, %v602
      %v609 = vsel %vm607, %v600, %v604
      %v610 = vsel %vm607, %v602, %v598
      %v611 = vsel %vm607, %v604, %v600
      %v612 = vld [vmem:[%s1] sm:$0x3]
      %v614 = vlaneseq
      %v615 = vshrl.u32 %v614, 7
      %v616 = vsub.s32 0, %v615
      %v617 = vrot.slane %v612, %v616
      %v618 = vlaneseq
      %v619 = vshrl.u32 %v618, 7
      %v620 = vsub.s32 1, %v619
      %v621 = vrot.slane %v612, %v620
      %v624 = vmul.f32 %v610, %v617
      %v625 = vmul.f32 %v608, %v621
      %v626 = vmul.f32 %v611, %v617
      %v627 = vmul.f32 %v609, %v621
      %628 = vrot.lane.b32.xlu0 %v593, 16
      %v629 = vpop.permute.xlu0 %628
      %630 = vrot.lane.b32.xlu0 %v595, 16
      %v631 = vpop.permute.xlu0 %630
      %632 = vrot.lane.b32.xlu0 %v594, 16
      %v633 = vpop.permute.xlu0 %632
      %634 = vrot.lane.b32.xlu0 %v596, 16
      %v635 = vpop.permute.xlu0 %634
      %vm636 = vcmp.lt.s32.totalorder %v606, 16
      %v637 = vsel %vm636, %v629, %v633
      %v638 = vsel %vm636, %v631, %v635
      %v639 = vsel %vm636, %v633, %v629
      %v640 = vsel %vm636, %v635, %v631
      %s641 = scalar_lea.vmem %s1, 2
      %v642 = vld [vmem:[%s641] sm:$0x3]
      %v644 = vlaneseq
      %v645 = vshrl.u32 %v644, 7
      %v646 = vsub.s32 0, %v645
      %v647 = vrot.slane %v642, %v646
      %v648 = vlaneseq
      %v649 = vshrl.u32 %v648, 7
      %v650 = vsub.s32 1, %v649
      %v651 = vrot.slane %v642, %v650
      %v654 = vmul.f32 %v639, %v647
      %v655 = vmul.f32 %v637, %v651
      %v656 = vmul.f32 %v640, %v647
      %v657 = vmul.f32 %v638, %v651
      %658 = vrot.lane.b32.xlu0 %v593, 15
      %v659 = vpop.permute.xlu0 %658
      %660 = vrot.lane.b32.xlu0 %v595, 15
      %v661 = vpop.permute.xlu0 %660
      %662 = vrot.lane.b32.xlu0 %v594, 15
      %v663 = vpop.permute.xlu0 %662
      %664 = vrot.lane.b32.xlu0 %v596, 15
      %v665 = vpop.permute.xlu0 %664
      %vm666 = vcmp.lt.s32.totalorder %v606, 15
      %v667 = vsel %vm666, %v659, %v663
      %v668 = vsel %vm666, %v661, %v665
      %v669 = vsel %vm666, %v663, %v659
      %v670 = vsel %vm666, %v665, %v661
      %s671 = scalar_lea.vmem %s1, 4
      %v672 = vld [vmem:[%s671] sm:$0x3]
      %v674 = vlaneseq
      %v675 = vshrl.u32 %v674, 7
      %v676 = vsub.s32 0, %v675
      %v677 = vrot.slane %v672, %v676
      %v678 = vlaneseq
      %v679 = vshrl.u32 %v678, 7
      %v680 = vsub.s32 1, %v679
      %v681 = vrot.slane %v672, %v680
      %v684 = vmul.f32 %v669, %v677
      %v685 = vmul.f32 %v667, %v681
      %v686 = vmul.f32 %v670, %v677
      %v687 = vmul.f32 %v668, %v681
      %688 = vrot.lane.b32.xlu0 %v593, 1
      %v689 = vpop.permute.xlu0 %688
      %690 = vrot.lane.b32.xlu0 %v595, 1
      %v691 = vpop.permute.xlu0 %690
      %692 = vrot.lane.b32.xlu0 %v594, 1
      %v693 = vpop.permute.xlu0 %692
      %694 = vrot.lane.b32.xlu0 %v596, 1
      %v695 = vpop.permute.xlu0 %694
      %vm696 = vcmp.lt.s32.totalorder %v606, 1
      %v697 = vsel %vm696, %v689, %v693
      %v698 = vsel %vm696, %v691, %v695
      %v699 = vsel %vm696, %v693, %v689
      %v700 = vsel %vm696, %v695, %v691
      %s701 = scalar_lea.vmem %s1, 6
      %v702 = vld [vmem:[%s701] sm:$0x3]
      %v704 = vlaneseq
      %v705 = vshrl.u32 %v704, 7
      %v706 = vsub.s32 0, %v705
      %v707 = vrot.slane %v702, %v706
      %v708 = vlaneseq
      %v709 = vshrl.u32 %v708, 7
      %v710 = vsub.s32 1, %v709
      %v711 = vrot.slane %v702, %v710
      %v714 = vmul.f32 %v699, %v707
      %v715 = vmul.f32 %v697, %v711
      %v716 = vmul.f32 %v700, %v707
      %v717 = vmul.f32 %v698, %v711
      %s718 = scalar_lea.vmem %s1, 8
      %v719 = vld [vmem:[%s718] sm:$0x3]
      %v721 = vlaneseq
      %v722 = vshrl.u32 %v721, 7
      %v723 = vsub.s32 0, %v722
      %v724 = vrot.slane %v719, %v723
      %v725 = vlaneseq
      %v726 = vshrl.u32 %v725, 7
      %v727 = vsub.s32 1, %v726
      %v728 = vrot.slane %v719, %v727
      %v731 = vmul.f32 %v593, %v724
      %v732 = vmul.f32 %v594, %v728
      %v733 = vmul.f32 %v595, %v724
      %v734 = vmul.f32 %v596, %v728
      %735 = vrot.lane.b32.xlu0 %v593, 127
      %v736 = vpop.permute.xlu0 %735
      %737 = vrot.lane.b32.xlu0 %v595, 127
      %v738 = vpop.permute.xlu0 %737
      %739 = vrot.lane.b32.xlu0 %v594, 127
      %v740 = vpop.permute.xlu0 %739
      %741 = vrot.lane.b32.xlu0 %v596, 127
      %v742 = vpop.permute.xlu0 %741
      %vm743 = vcmp.lt.s32.totalorder %v606, 127
      %v744 = vsel %vm743, %v736, %v740
      %v745 = vsel %vm743, %v738, %v742
      %v746 = vsel %vm743, %v740, %v736
      %v747 = vsel %vm743, %v742, %v738
      %s748 = scalar_lea.vmem %s1, 10
      %v749 = vld [vmem:[%s748] sm:$0x3]
      %v751 = vlaneseq
      %v752 = vshrl.u32 %v751, 7
      %v753 = vsub.s32 0, %v752
      %v754 = vrot.slane %v749, %v753
      %v755 = vlaneseq
      %v756 = vshrl.u32 %v755, 7
      %v757 = vsub.s32 1, %v756
      %v758 = vrot.slane %v749, %v757
      %v761 = vmul.f32 %v744, %v754
      %v762 = vmul.f32 %v746, %v758
      %v763 = vmul.f32 %v745, %v754
      %v764 = vmul.f32 %v747, %v758
      %765 = vrot.lane.b32.xlu0 %v593, 113
      %v766 = vpop.permute.xlu0 %765
      %767 = vrot.lane.b32.xlu0 %v595, 113
      %v768 = vpop.permute.xlu0 %767
      %769 = vrot.lane.b32.xlu0 %v594, 113
      %v770 = vpop.permute.xlu0 %769
      %771 = vrot.lane.b32.xlu0 %v596, 113
      %v772 = vpop.permute.xlu0 %771
      %vm773 = vcmp.lt.s32.totalorder %v606, 113
      %v774 = vsel %vm773, %v766, %v770
      %v775 = vsel %vm773, %v768, %v772
      %v776 = vsel %vm773, %v770, %v766
      %v777 = vsel %vm773, %v772, %v768
      %s778 = scalar_lea.vmem %s1, 12
      %v779 = vld [vmem:[%s778] sm:$0x3]
      %v781 = vlaneseq
      %v782 = vshrl.u32 %v781, 7
      %v783 = vsub.s32 0, %v782
      %v784 = vrot.slane %v779, %v783
      %v785 = vlaneseq
      %v786 = vshrl.u32 %v785, 7
      %v787 = vsub.s32 1, %v786
      %v788 = vrot.slane %v779, %v787
      %v791 = vmul.f32 %v774, %v784
      %v792 = vmul.f32 %v776, %v788
      %v793 = vmul.f32 %v775, %v784
      %v794 = vmul.f32 %v777, %v788
      %795 = vrot.lane.b32.xlu0 %v593, 112
      %v796 = vpop.permute.xlu0 %795
      %797 = vrot.lane.b32.xlu0 %v595, 112
      %v798 = vpop.permute.xlu0 %797
      %799 = vrot.lane.b32.xlu0 %v594, 112
      %v800 = vpop.permute.xlu0 %799
      %801 = vrot.lane.b32.xlu0 %v596, 112
      %v802 = vpop.permute.xlu0 %801
      %vm803 = vcmp.lt.s32.totalorder %v606, 112
      %v804 = vsel %vm803, %v796, %v800
      %v805 = vsel %vm803, %v798, %v802
      %v806 = vsel %vm803, %v800, %v796
      %v807 = vsel %vm803, %v802, %v798
      %s808 = scalar_lea.vmem %s1, 14
      %v809 = vld [vmem:[%s808] sm:$0x3]
      %v811 = vlaneseq
      %v812 = vshrl.u32 %v811, 7
      %v813 = vsub.s32 0, %v812
      %v814 = vrot.slane %v809, %v813
      %v815 = vlaneseq
      %v816 = vshrl.u32 %v815, 7
      %v817 = vsub.s32 1, %v816
      %v818 = vrot.slane %v809, %v817
      %v821 = vmul.f32 %v804, %v814
      %v822 = vmul.f32 %v806, %v818
      %v823 = vmul.f32 %v805, %v814
      %v824 = vmul.f32 %v807, %v818
      %825 = vrot.lane.b32.xlu0 %v593, 111
      %v826 = vpop.permute.xlu0 %825
      %827 = vrot.lane.b32.xlu0 %v595, 111
      %v828 = vpop.permute.xlu0 %827
      %829 = vrot.lane.b32.xlu0 %v594, 111
      %v830 = vpop.permute.xlu0 %829
      %831 = vrot.lane.b32.xlu0 %v596, 111
      %v832 = vpop.permute.xlu0 %831
      %vm833 = vcmp.lt.s32.totalorder %v606, 111
      %v834 = vsel %vm833, %v826, %v830
      %v835 = vsel %vm833, %v828, %v832
      %v836 = vsel %vm833, %v830, %v826
      %v837 = vsel %vm833, %v832, %v828
      %s838 = scalar_lea.vmem %s1, 16
      %v839 = vld [vmem:[%s838] sm:$0x3]
      %v841 = vlaneseq
      %v842 = vshrl.u32 %v841, 7
      %v843 = vsub.s32 0, %v842
      %v844 = vrot.slane %v839, %v843
      %v845 = vlaneseq
      %v846 = vshrl.u32 %v845, 7
      %v847 = vsub.s32 1, %v846
      %v848 = vrot.slane %v839, %v847
      %v851 = vmul.f32 %v834, %v844
      %v852 = vmul.f32 %v836, %v848
      %v853 = vmul.f32 %v835, %v844
      %v854 = vmul.f32 %v837, %v848
      %vm859 = vcmask 1041408
      %v860 = vrot.slane %v654, 6
      %v861 = vrot.slane %v655, 6
      %v862 = vrot.slane %v656, 6
      %v863 = vsel %vm859, %v860, %v862
      %v864 = vrot.slane %v657, 6
      %v865 = vsel %vm859, %v861, %v864
      %v874 = vrot.slane %v684, 4
      %v875 = vrot.slane %v685, 4
      %v876 = vrot.slane %v686, 4
      %v877 = vsel %vm509, %v874, %v876
      %v878 = vrot.slane %v687, 4
      %v879 = vsel %vm509, %v875, %v878
      %vm888 = vcmask 1045504
      %v889 = vrot.slane %v714, 2
      %v890 = vrot.slane %v715, 2
      %v891 = vrot.slane %v716, 2
      %v892 = vsel %vm888, %v889, %v891
      %v893 = vrot.slane %v717, 2
      %v894 = vsel %vm888, %v890, %v893
      %v903 = vrot.slane %v761, 6
      %v904 = vrot.slane %v762, 6
      %v905 = vrot.slane %v763, 6
      %v906 = vsel %vm859, %v903, %v905
      %v907 = vrot.slane %v764, 6
      %v908 = vsel %vm859, %v904, %v907
      %v917 = vrot.slane %v791, 4
      %v918 = vrot.slane %v792, 4
      %v919 = vrot.slane %v793, 4
      %v920 = vsel %vm509, %v917, %v919
      %v921 = vrot.slane %v794, 4
      %v922 = vsel %vm509, %v918, %v921
      %v931 = vrot.slane %v821, 2
      %v932 = vrot.slane %v822, 2
      %v933 = vrot.slane %v823, 2
      %v934 = vsel %vm888, %v931, %v933
      %v935 = vrot.slane %v824, 2
      %v936 = vsel %vm888, %v932, %v935
      %v941 = vsel %vm859, %v626, %v860
      %v942 = vsel %vm859, %v627, %v861
      %v943 = vsel %vm509, %v863, %v874
      %v944 = vsel %vm509, %v865, %v875
      %v945 = vsel %vm888, %v877, %v889
      %v946 = vsel %vm888, %v879, %v890
      %v947 = vsel %vm859, %v733, %v903
      %v948 = vsel %vm859, %v734, %v904
      %v949 = vsel %vm509, %v906, %v917
      %v950 = vsel %vm509, %v908, %v918
      %v951 = vsel %vm888, %v920, %v931
      %v952 = vsel %vm888, %v922, %v932
      %v953 = vld [vmem:[%s6] sm:$0xff]
      %v954 = vld [vmem:[%s6 + $0x8] sm:$0x3]
      %v955 = vld [vmem:[%s7] sm:$0xff]
      %v956 = vld [vmem:[%s7 + $0x8] sm:$0x3]
      %958 = vset.pattern.permute.xlu0 0
      %959 = vperm.xlu0 %958, %v955
      %v960 = vpop.permute.xlu0 %959
      %963 = vset.pattern.permute.xlu0 0
      %964 = vperm.xlu0 %963, %v956
      %v965 = vpop.permute.xlu0 %964
      %vm967 = vcmask 736256
      %v969 = vsel %vm967, %v953, 0
      %v972 = vsel %vm967, %v954, 0
      %v975 = vsel %vm859, %v853, 0
      %v978 = vsel %vm859, %v854, 0
      %980 = vmatprep.subr.mxu0 %v625
      %981 = vmatpush1.msra.mxu0 %v624
      %982 = vmatprep.subr.mxu0 %v942
      %983 = vmatpush1.msra.mxu0 %v941
      %984 = vmatprep.subr.mxu0 %v944
      %985 = vmatpush1.msra.mxu0 %v943
      %986 = vmatprep.subr.mxu0 %v946
      %987 = vmatpush1.msra.mxu0 %v945
      %988 = vmatprep.subr.mxu0 %v894
      %989 = vmatpush1.msra.mxu0 %v892
      %990 = vmatprep.subr.mxu0 %v732
      %991 = vmatpush1.msra.mxu0 %v731
      %992 = vmatprep.subr.mxu0 %v948
      %993 = vmatpush1.msra.mxu0 %v947
      %994 = vmatprep.subr.mxu0 %v950
      %995 = vmatpush1.msra.mxu0 %v949
      %996 = vmatprep.subr.mxu0 %v952
      %997 = vmatpush1.msra.mxu0 %v951
      %998 = vmatprep.subr.mxu0 %v936
      %999 = vmatpush1.msra.mxu0 %v934
      %1000 = vmatprep.subr.mxu0 %v852
      %1001 = vmatpush1.msra.mxu0 %v851
      %1002 = vmatprep.subr.mxu0 %v978
      %1003 = vmatpush1.msra.mxu0 %v975
      %1004 = vmatprep.subr.mxu0 0.0
      %1005 = vmatpush1.msra.mxu0 0.0
      %1006 = vmatprep.subr.mxu0 0.0
      %1007 = vmatpush1.msra.mxu0 0.0
      %1008 = vmatprep.subr.mxu0 0.0
      %1009 = vmatpush1.msra.mxu0 0.0
      %1010 = vmatprep.subr.mxu0 0.0
      %1011 = vmatpush1.msra.mxu0 0.0
      %1012 = vmatprep.subr.mxu0 0.0
      %1013 = vmatpush1.msra.mxu0 0.0
      %1014 = vmatprep.subr.mxu0 0.0
      %1015 = vmatpush1.msra.mxu0 0.0
      %1016 = vmatprep.subr.mxu0 0.0
      %1017 = vmatpush1.msra.mxu0 0.0
      %1018 = vmatprep.subr.mxu0 0.0
      %1019 = vmatpush1.msra.mxu0 0.0
      %1020 = vmatprep.subr.mxu0 0.0
      %1021 = vmatpush1.msra.mxu0 0.0
      %1022 = vmatprep.subr.mxu0 0.0
      %1023 = vmatpush1.msra.mxu0 0.0
      %1024 = vmatprep.subr.mxu0 0.0
      %1025 = vmatpush1.msra.mxu0 0.0
      %1026 = vmatprep.subr.mxu0 0.0
      %1027 = vmatpush1.msra.mxu0 0.0
      %1028 = vmatprep.subr.mxu0 0.0
      %1029 = vmatpush1.msra.mxu0 0.0
      %1030 = vmatprep.subr.mxu0 0.0
      %1031 = vmatpush1.msra.mxu0 0.0
      %1032 = vmatprep.subr.mxu0 0.0
      %1033 = vmatpush1.msra.mxu0 0.0
      %1034 = vmatprep.subr.mxu0 0.0
      %1035 = vmatpush1.msra.mxu0 0.0
      %1036 = vmatprep.subr.mxu0 0.0
      %1037 = vmatpush1.msra.mxu0 0.0
      %1038 = vmatprep.subr.mxu0 0.0
      %1039 = vmatpush1.msra.mxu0 0.0
      %1040 = vmatprep.subr.mxu0 0.0
      %1041 = vmatpush1.msra.mxu0 0.0
      %1042 = vmatprep.subr.mxu0 0.0
      %1043 = vmatpush1.msra.mxu0 0.0
      %1044 = vmatprep.mubr.f32.mxu0 0.0
      %1045 = vmatmul.mubr.f32.gmra.mrb[0].mxu0 %v969
      %v1046 = vpop.f32.mrb[0].mxu0
      %v1047 = vadd.f32 %v960, %v1046
      %v1048 = vpop.f32.mrb[0].mxu0
      %v1049 = vadd.f32 %v960, %v1048
      %1050 = vmatprep.mubr.f32.mxu0 0.0
      %1051 = vmatmul.mubr.f32.gmra.mrb[0].mxu0 %v972
      %v1052 = vpop.f32.mrb[0].mxu0
      %v1053 = vadd.f32 %v965, %v1052
      %v1054 = vpop.f32.mrb[0].mxu0
      %v1055 = vadd.f32 %v965, %v1054
      %1056 = vdwg.mxu0
      %v1057 = vmax.f32 %v1047, 0.0
      %v1058 = vmax.f32 %v1049, 0.0
      %v1059 = vmax.f32 %v1053, 0.0
      %v1060 = vmax.f32 %v1055, 0.0
      %v1061 = vld [vmem:[%s8] sm:$0xff]
      %v1062 = vld [vmem:[%s8 + $0x8] sm:$0xff]
      %v1063 = vld [vmem:[%s8 + $0x10] sm:$0xf]
      %v1064 = vld [vmem:[%s9] sm:$0xff]
      %v1065 = vld [vmem:[%s9 + $0x8] sm:$0xff]
      %v1066 = vld [vmem:[%s9 + $0x10] sm:$0xf]
      %1068 = vset.pattern.permute.xlu0 0
      %1069 = vperm.xlu0 %1068, %v1064
      %v1070 = vpop.permute.xlu0 %1069
      %1073 = vset.pattern.permute.xlu0 0
      %1074 = vperm.xlu0 %1073, %v1065
      %v1075 = vpop.permute.xlu0 %1074
      %1078 = vset.pattern.permute.xlu0 0
      %1079 = vperm.xlu0 %1078, %v1066
      %v1080 = vpop.permute.xlu0 %1079
      %vm1082 = vcmask 80896
      %v1084 = vsel %vm1082, %v1061, 0
      %v1087 = vsel %vm1082, %v1062, 0
      %v1090 = vsel %vm1082, %v1063, 0
      %v1093 = vsel %vm859, %v1059, 0
      %v1096 = vsel %vm859, %v1060, 0
      %1098 = vmatprep.subr.mxu0 %v1058
      %1099 = vmatpush1.msra.mxu0 %v1057
      %1100 = vmatprep.subr.mxu0 %v1096
      %1101 = vmatpush1.msra.mxu0 %v1093
      %1102 = vmatprep.subr.mxu0 0.0
      %1103 = vmatpush1.msra.mxu0 0.0
      %1104 = vmatprep.subr.mxu0 0.0
      %1105 = vmatpush1.msra.mxu0 0.0
      %1106 = vmatprep.subr.mxu0 0.0
      %1107 = vmatpush1.msra.mxu0 0.0
      %1108 = vmatprep.subr.mxu0 0.0
      %1109 = vmatpush1.msra.mxu0 0.0
      %1110 = vmatprep.subr.mxu0 0.0
      %1111 = vmatpush1.msra.mxu0 0.0
      %1112 = vmatprep.subr.mxu0 0.0
      %1113 = vmatpush1.msra.mxu0 0.0
      %1114 = vmatprep.subr.mxu0 0.0
      %1115 = vmatpush1.msra.mxu0 0.0
      %1116 = vmatprep.subr.mxu0 0.0
      %1117 = vmatpush1.msra.mxu0 0.0
      %1118 = vmatprep.subr.mxu0 0.0
      %1119 = vmatpush1.msra.mxu0 0.0
      %1120 = vmatprep.subr.mxu0 0.0
      %1121 = vmatpush1.msra.mxu0 0.0
      %1122 = vmatprep.subr.mxu0 0.0
      %1123 = vmatpush1.msra.mxu0 0.0
      %1124 = vmatprep.subr.mxu0 0.0
      %1125 = vmatpush1.msra.mxu0 0.0
      %1126 = vmatprep.subr.mxu0 0.0
      %1127 = vmatpush1.msra.mxu0 0.0
      %1128 = vmatprep.subr.mxu0 0.0
      %1129 = vmatpush1.msra.mxu0 0.0
      %1130 = vmatprep.subr.mxu0 0.0
      %1131 = vmatpush1.msra.mxu0 0.0
      %1132 = vmatprep.subr.mxu0 0.0
      %1133 = vmatpush1.msra.mxu0 0.0
      %1134 = vmatprep.subr.mxu0 0.0
      %1135 = vmatpush1.msra.mxu0 0.0
      %1136 = vmatprep.subr.mxu0 0.0
      %1137 = vmatpush1.msra.mxu0 0.0
      %1138 = vmatprep.subr.mxu0 0.0
      %1139 = vmatpush1.msra.mxu0 0.0
      %1140 = vmatprep.subr.mxu0 0.0
      %1141 = vmatpush1.msra.mxu0 0.0
      %1142 = vmatprep.subr.mxu0 0.0
      %1143 = vmatpush1.msra.mxu0 0.0
      %1144 = vmatprep.subr.mxu0 0.0
      %1145 = vmatpush1.msra.mxu0 0.0
      %1146 = vmatprep.subr.mxu0 0.0
      %1147 = vmatpush1.msra.mxu0 0.0
      %1148 = vmatprep.subr.mxu0 0.0
      %1149 = vmatpush1.msra.mxu0 0.0
      %1150 = vmatprep.subr.mxu0 0.0
      %1151 = vmatpush1.msra.mxu0 0.0
      %1152 = vmatprep.subr.mxu0 0.0
      %1153 = vmatpush1.msra.mxu0 0.0
      %1154 = vmatprep.subr.mxu0 0.0
      %1155 = vmatpush1.msra.mxu0 0.0
      %1156 = vmatprep.subr.mxu0 0.0
      %1157 = vmatpush1.msra.mxu0 0.0
      %1158 = vmatprep.subr.mxu0 0.0
      %1159 = vmatpush1.msra.mxu0 0.0
      %1160 = vmatprep.subr.mxu0 0.0
      %1161 = vmatpush1.msra.mxu0 0.0
      %1162 = vmatprep.mubr.f32.mxu0 0.0
      %1163 = vmatmul.mubr.f32.gmra.mrb[0].mxu0 %v1084
      %v1164 = vpop.f32.mrb[0].mxu0
      %v1165 = vadd.f32 %v1070, %v1164
      %v1166 = vpop.f32.mrb[0].mxu0
      %v1167 = vadd.f32 %v1070, %v1166
      %1168 = vmatprep.mubr.f32.mxu0 0.0
      %1169 = vmatmul.mubr.f32.gmra.mrb[0].mxu0 %v1087
      %v1170 = vpop.f32.mrb[0].mxu0
      %v1171 = vadd.f32 %v1075, %v1170
      %v1172 = vpop.f32.mrb[0].mxu0
      %v1173 = vadd.f32 %v1075, %v1172
      %1174 = vmatprep.mubr.f32.mxu0 0.0
      %1175 = vmatmul.mubr.f32.gmra.mrb[0].mxu0 %v1090
      %v1176 = vpop.f32.mrb[0].mxu0
      %v1177 = vadd.f32 %v1080, %v1176
      %v1178 = vpop.f32.mrb[0].mxu0
      %v1179 = vadd.f32 %v1080, %v1178
      %1180 = vdwg.mxu0
      %v1181 = vadd.f32 %v1165, %v482
      %v1182 = vadd.f32 %v1167, %v483
      %v1183 = vadd.f32 %v1171, %v484
      %v1184 = vadd.f32 %v1173, %v485
      %v1185 = vadd.f32 %v1177, %v486
      %v1186 = vadd.f32 %v1179, %v487
      %v1187 = vmax.f32 %v1181, 0.0
      %v1188 = vmax.f32 %v1182, 0.0
      %v1189 = vmax.f32 %v1183, 0.0
      %v1190 = vmax.f32 %v1184, 0.0
      %v1191 = vmax.f32 %v1185, 0.0
      %v1192 = vmax.f32 %v1186, 0.0
      %1193 = vst [vmem:[%s359] sm:$0xff] %v1187
      %1194 = vst [vmem:[%s359 + $0x8] sm:$0xff] %v1188
      %1195 = vst [vmem:[%s359 + $0x10] sm:$0xff] %v1189
      %1196 = vst [vmem:[%s359 + $0x18] sm:$0xff] %v1190
      %1197 = vst [vmem:[%s359 + $0x20] sm:$0xf] %v1191
      %1198 = vst [vmem:[%s359 + $0x28] sm:$0xf] %v1192
      %p1199 = scmp.lt.s32.totalorder %s21, 1
      %s1200 = scalar_select %p1199, %s21, 1
      %s1201 = smul.addr %s1200, 6
      %s1202 = smul.addr %s1201, 8
      %s1203 = scalar_lea.vmem %s10, %s1202
      // Predicated region
      $region61: #{tpu_custom_call.1} parent=59 // pred_check
        %p1204 = pneg %p254
      $region62: #{tpu_custom_call.1} parent=59 // pred_check_branch
        %1206 = sbr.rel (%p1204) target = $region64
      $region63: #{tpu_custom_call.1} parent=59 // pred_region
        _
      $region64: #{tpu_custom_call.1} parent=59 // pred_fallthru
        _
    $region60: #{tpu_custom_call.1} parent=5 // pred_fallthru
      _
    %p1207 = scmp.le.s32.totalorder 2, %s16
    // Predicated region
    $region65: #{tpu_custom_call.1} parent=5 // pred_check
      %p1208 = pneg %p1207
    $region66: #{tpu_custom_call.1} parent=5 // pred_check_branch
      %1210 = sbr.rel (%p1208) target = $region68
    $region67: #{tpu_custom_call.1} parent=5 // pred_region
      %s1211 = ssub.s32 %s16, 2
      // Predicated region
      $region69: #{tpu_custom_call.1} parent=67 // pred_check
        %p1212 = pneg %p260
      $region70: #{tpu_custom_call.1} parent=67 // pred_check_branch
        %1214 = sbr.rel (%p1212) target = $region72
      $region71: #{tpu_custom_call.1} parent=67 // pred_region
        %p1215 = scmp.lt.s32.totalorder %s22, 1
        %s1216 = scalar_select %p1215, %s22, 1
        %s1217 = smul.addr %s1216, 6
        %s1218 = smul.addr %s1217, 8
        %s1219 = scalar_lea.vmem %s10, %s1218
      $region72: #{tpu_custom_call.1} parent=67 // pred_fallthru
        _
    $region68: #{tpu_custom_call.1} parent=5 // pred_fallthru
      _
  $region6: #{tpu_custom_call.1} parent=0 // loop_footer
    %s20 = sadd.s32 1, %s16
  $region7: #{tpu_custom_call.1} parent=0 // loop_footer_branch
    %15 = sbr.rel target = $region3
  $region8: #{tpu_custom_call.1} parent=0 // loop_exit
    _

</llo_original>
